<compile_context>
chip_gen: v6e
topology: v6e:2x2x1
jax: 0.10.0
libtpu: 0.0.40
codegen_flags: <defaults>
</compile_context>

<pallas_src>
import functools

import jax
import jax.numpy as jnp
from jax.experimental import pallas as pl
from jax.experimental.pallas import tpu as pltpu

LANE = 128      # last-dim (lane) tiling granularity
SUBLANE = 8     # second-to-last (sublane) tiling granularity


def _round_up(n, m):
    return ((n + m - 1) // m) * m


def _mlp_kernel(*refs, activation, valid_dims):
    """Fused MLP: refs = (x_ref, w0, b0, w1, b1, ..., wN, bN, o_ref).

    All refs are full, padded arrays resident in VMEM.  Layers are unrolled
    statically; the running activation stays on-chip between layers.
    `valid_dims[i]` is the un-padded feature width of layer i's input
    (valid_dims[i+1] is the un-padded output width of layer i), used only to
    mask padded lanes for the softmax path.
    """
    x_ref = refs[0]
    o_ref = refs[-1]
    wb_refs = refs[1:-1]
    n_layers = len(wb_refs) // 2

    y = x_ref[...]
    for li in range(n_layers):
        w = wb_refs[2 * li][...]
        b = wb_refs[2 * li + 1][...]
        y = jnp.dot(y, w, preferred_element_type=jnp.float32) + b
        if li != n_layers - 1:  # activation on all layers except the last
            if activation == "softmax":
                valid = valid_dims[li + 1]
                padded = y.shape[-1]
                if valid < padded:
                    lane = jax.lax.broadcasted_iota(jnp.int32, y.shape, dimension=1)
                    y = jnp.where(lane < valid, y, -jnp.inf)
                m = jnp.max(y, axis=-1, keepdims=True)
                e = jnp.exp(y - m)
                denom = jnp.sum(e, axis=-1, keepdims=True)
                y = e * pl.reciprocal(denom, approx=True)
            else:
                # F.leaky_relu default negative_slope = 0.01
                y = jnp.where(y >= 0, y, 0.01 * y)
    o_ref[...] = y.astype(o_ref.dtype)


def neural_network_forward(params, x, activation):
    """Matches NeuralNetwork.forward: activation on all layers except the last.

    params: list of (W, b) with W shaped (in, out).  Runs the whole network as a
    single fused Pallas call on padded, lane-dense operands.
    """
    B, in_dim = x.shape
    dims = [in_dim] + [w.shape[1] for (w, _) in params]          # true widths
    pdims = [_round_up(d, LANE) for d in dims]                   # padded widths
    Bp = _round_up(B, SUBLANE)

    # Zero-pad input, weights and biases (zero padding is exactly preserved by
    # the matmul + bias + leaky_relu chain; softmax masks padded lanes in-kernel).
    x_p = jnp.zeros((Bp, pdims[0]), jnp.float32).at[:B, :in_dim].set(x)
    inputs = [x_p]
    for i, (w, b) in enumerate(params):
        wp = jnp.zeros((pdims[i], pdims[i + 1]), jnp.float32).at[: w.shape[0], : w.shape[1]].set(w)
        bp = jnp.zeros((1, pdims[i + 1]), jnp.float32).at[:, : b.shape[0]].set(b)
        inputs += [wp, bp]

    kernel = functools.partial(
        _mlp_kernel, activation=activation, valid_dims=tuple(dims)
    )

    n_layers = len(params)
    flops = 2 * Bp * sum(pdims[i] * pdims[i + 1] for i in range(n_layers))
    bytes_accessed = sum(a.size * a.dtype.itemsize for a in inputs) + Bp * pdims[-1] * 4
    transcendentals = (Bp * sum(pdims[1:-1])) if activation == "softmax" else 0

    out_p = pl.pallas_call(
        kernel,
        out_shape=jax.ShapeDtypeStruct((Bp, pdims[-1]), jnp.float32),
        in_specs=[pl.BlockSpec(memory_space=pltpu.MemorySpace.VMEM)] * len(inputs),
        out_specs=pl.BlockSpec(memory_space=pltpu.MemorySpace.VMEM),
        cost_estimate=pl.CostEstimate(
            flops=flops,
            transcendentals=transcendentals,
            bytes_accessed=bytes_accessed,
        ),
    )(*inputs)

    return out_p[:B, : dims[-1]]


def init_params(key, input_dim, output_dim, hidden_size, hidden_layers):
    """Deterministic parameter init (uniform, fan-in scaled, like torch Linear)."""
    dims = [input_dim] + [hidden_size] * (hidden_layers + 1) + [output_dim]
    params = []
    for i in range(len(dims) - 1):
        key, kw, kb = jax.random.split(key, 3)
        fan_in = dims[i]
        bound = 1.0 / jnp.sqrt(fan_in)
        # weight stored as (in, out) == transpose of torch's (out, in)
        w = jax.random.uniform(kw, (dims[i], dims[i + 1]), jnp.float32, -bound, bound)
        b = jax.random.uniform(kb, (dims[i + 1],), jnp.float32, -bound, bound)
        params.append((w, b))
    return params


def reference_forward(params, s, activation):
    """Pure-JAX reference for correctness checking."""
    for (w, b) in params[:-1]:
        s = s @ w + b
        if activation == "softmax":
            s = jax.nn.softmax(s, axis=-1)
        else:
            s = jnp.where(s >= 0, s, 0.01 * s)
    w, b = params[-1]
    return s @ w + b


if __name__ == "__main__":
    # Small shapes consistent with the module: an MLP over feature vectors.
    batch = 8
    input_dim = 16
    hidden_size = 32
    hidden_layers = 2
    output_dim = 4

    key = jax.random.PRNGKey(0)
    key, kx = jax.random.split(key)
    x = jax.random.normal(kx, (batch, input_dim), dtype=jnp.float32)
    params = init_params(key, input_dim, output_dim, hidden_size, hidden_layers)

    fwd = jax.jit(neural_network_forward, static_argnames=("activation",))

    # leaky_relu path (default activation in the spec's `else` branch)
    out = jax.block_until_ready(fwd(params, x, "leaky_relu"))
    ref = reference_forward(params, x, "leaky_relu")
    assert out.shape == (batch, output_dim)
    assert jnp.allclose(out, ref, atol=1e-5, rtol=1e-5), "leaky_relu mismatch vs reference"

    # softmax path (approx=True reciprocal -> slightly looser tolerance)
    out_sm = jax.block_until_ready(fwd(params, x, "softmax"))
    ref_sm = reference_forward(params, x, "softmax")
    assert out_sm.shape == (batch, output_dim)
    assert jnp.allclose(out_sm, ref_sm, atol=2e-3, rtol=2e-3), "softmax mismatch vs reference"

    print("KERNEL_OK")
</pallas_src>

<mosaic_0001>
module attributes {stable_mosaic.version = 11 : i64} {
  func.func @_mlp_kernel(%arg0: memref<8x128xf32, #tpu.memory_space<vmem>>, %arg1: memref<128x128xf32, #tpu.memory_space<vmem>>, %arg2: memref<1x128xf32, #tpu.memory_space<vmem>>, %arg3: memref<128x128xf32, #tpu.memory_space<vmem>>, %arg4: memref<1x128xf32, #tpu.memory_space<vmem>>, %arg5: memref<128x128xf32, #tpu.memory_space<vmem>>, %arg6: memref<1x128xf32, #tpu.memory_space<vmem>>, %arg7: memref<128x128xf32, #tpu.memory_space<vmem>>, %arg8: memref<1x128xf32, #tpu.memory_space<vmem>>, %arg9: memref<8x128xf32, #tpu.memory_space<vmem>>) attributes {dimension_semantics = [], scalar_prefetch = 0 : i64, scratch_operands = 0 : i64, tpu.core_type = #tpu.core_type<tc>} {
    %c0 = arith.constant 0 : index
    %c0_0 = arith.constant 0 : index
    %0 = vector.load %arg0[%c0, %c0_0] : memref<8x128xf32, #tpu.memory_space<vmem>>, vector<8x128xf32>
    %c0_1 = arith.constant 0 : index
    %c0_2 = arith.constant 0 : index
    %1 = vector.load %arg1[%c0_1, %c0_2] : memref<128x128xf32, #tpu.memory_space<vmem>>, vector<128x128xf32>
    %c0_3 = arith.constant 0 : index
    %c0_4 = arith.constant 0 : index
    %2 = vector.load %arg2[%c0_3, %c0_4] : memref<1x128xf32, #tpu.memory_space<vmem>>, vector<1x128xf32>
    %cst = arith.constant dense<0.000000e+00> : vector<8x128xf32>
    %3 = tpu.matmul %0, %1, %cst {dimension_numbers = #tpu.dot_dimension_numbers<[1], [0], [0], [1], [0, 0, 1, 1], [], []>} : vector<8x128xf32>, vector<128x128xf32>, vector<8x128xf32> -> vector<8x128xf32>
    %4 = vector.broadcast %2 : vector<1x128xf32> to vector<8x128xf32>
    %5 = arith.addf %3, %4 : vector<8x128xf32>
    %cst_5 = arith.constant 0.000000e+00 : f32
    %6 = vector.broadcast %cst_5 : f32 to vector<8x128xf32>
    %7 = arith.cmpf oge, %5, %6 : vector<8x128xf32>
    %cst_6 = arith.constant 0.00999999977 : f32
    %8 = vector.broadcast %cst_6 : f32 to vector<8x128xf32>
    %9 = arith.mulf %8, %5 : vector<8x128xf32>
    %10 = arith.select %7, %5, %9 : vector<8x128xi1>, vector<8x128xf32>
    %c0_7 = arith.constant 0 : index
    %c0_8 = arith.constant 0 : index
    %11 = vector.load %arg3[%c0_7, %c0_8] : memref<128x128xf32, #tpu.memory_space<vmem>>, vector<128x128xf32>
    %c0_9 = arith.constant 0 : index
    %c0_10 = arith.constant 0 : index
    %12 = vector.load %arg4[%c0_9, %c0_10] : memref<1x128xf32, #tpu.memory_space<vmem>>, vector<1x128xf32>
    %cst_11 = arith.constant dense<0.000000e+00> : vector<8x128xf32>
    %13 = tpu.matmul %10, %11, %cst_11 {dimension_numbers = #tpu.dot_dimension_numbers<[1], [0], [0], [1], [0, 0, 1, 1], [], []>} : vector<8x128xf32>, vector<128x128xf32>, vector<8x128xf32> -> vector<8x128xf32>
    %14 = vector.broadcast %12 : vector<1x128xf32> to vector<8x128xf32>
    %15 = arith.addf %13, %14 : vector<8x128xf32>
    %cst_12 = arith.constant 0.000000e+00 : f32
    %16 = vector.broadcast %cst_12 : f32 to vector<8x128xf32>
    %17 = arith.cmpf oge, %15, %16 : vector<8x128xf32>
    %cst_13 = arith.constant 0.00999999977 : f32
    %18 = vector.broadcast %cst_13 : f32 to vector<8x128xf32>
    %19 = arith.mulf %18, %15 : vector<8x128xf32>
    %20 = arith.select %17, %15, %19 : vector<8x128xi1>, vector<8x128xf32>
    %c0_14 = arith.constant 0 : index
    %c0_15 = arith.constant 0 : index
    %21 = vector.load %arg5[%c0_14, %c0_15] : memref<128x128xf32, #tpu.memory_space<vmem>>, vector<128x128xf32>
    %c0_16 = arith.constant 0 : index
    %c0_17 = arith.constant 0 : index
    %22 = vector.load %arg6[%c0_16, %c0_17] : memref<1x128xf32, #tpu.memory_space<vmem>>, vector<1x128xf32>
    %cst_18 = arith.constant dense<0.000000e+00> : vector<8x128xf32>
    %23 = tpu.matmul %20, %21, %cst_18 {dimension_numbers = #tpu.dot_dimension_numbers<[1], [0], [0], [1], [0, 0, 1, 1], [], []>} : vector<8x128xf32>, vector<128x128xf32>, vector<8x128xf32> -> vector<8x128xf32>
    %24 = vector.broadcast %22 : vector<1x128xf32> to vector<8x128xf32>
    %25 = arith.addf %23, %24 : vector<8x128xf32>
    %cst_19 = arith.constant 0.000000e+00 : f32
    %26 = vector.broadcast %cst_19 : f32 to vector<8x128xf32>
    %27 = arith.cmpf oge, %25, %26 : vector<8x128xf32>
    %cst_20 = arith.constant 0.00999999977 : f32
    %28 = vector.broadcast %cst_20 : f32 to vector<8x128xf32>
    %29 = arith.mulf %28, %25 : vector<8x128xf32>
    %30 = arith.select %27, %25, %29 : vector<8x128xi1>, vector<8x128xf32>
    %c0_21 = arith.constant 0 : index
    %c0_22 = arith.constant 0 : index
    %31 = vector.load %arg7[%c0_21, %c0_22] : memref<128x128xf32, #tpu.memory_space<vmem>>, vector<128x128xf32>
    %c0_23 = arith.constant 0 : index
    %c0_24 = arith.constant 0 : index
    %32 = vector.load %arg8[%c0_23, %c0_24] : memref<1x128xf32, #tpu.memory_space<vmem>>, vector<1x128xf32>
    %cst_25 = arith.constant dense<0.000000e+00> : vector<8x128xf32>
    %33 = tpu.matmul %30, %31, %cst_25 {dimension_numbers = #tpu.dot_dimension_numbers<[1], [0], [0], [1], [0, 0, 1, 1], [], []>} : vector<8x128xf32>, vector<128x128xf32>, vector<8x128xf32> -> vector<8x128xf32>
    %34 = vector.broadcast %32 : vector<1x128xf32> to vector<8x128xf32>
    %35 = arith.addf %33, %34 : vector<8x128xf32>
    %c0_26 = arith.constant 0 : index
    %c0_27 = arith.constant 0 : index
    %36 = vector.load %arg9[%c0_26, %c0_27] : memref<8x128xf32, #tpu.memory_space<vmem>>, vector<8x128xf32>
    tpu.vector_store %arg9[%c0_26, %c0_27], %35 {strides = array<i32>} : memref<8x128xf32, #tpu.memory_space<vmem>>, vector<8x128xf32>,
    return
  }
}

</mosaic_0001>

<llo_original>
// kernel: neural_network_forward.1
$region0: #{neural_network_forward.1}
  #allocation0 [shape = 'u32[]', space=smem, size = 0x4, offset = 0x4, fixed_abs, tag = 'smem constant byte address 0x4 - core index']
  #allocation1 [shape = 'u32[144,128]{1,0:T(1,128)}', space=vmem, size = 0x12000, scoped, tag = 'internal scratch']
  %s0 = inlined_call_operand.vmem [shape: f32[8,128], index: 0, kind: input, shape index: {}]
  %s1 = inlined_call_operand.vmem [shape: f32[128,128], index: 1, kind: input, shape index: {}]
  %s2 = inlined_call_operand.vmem [shape: f32[1,128], index: 2, kind: input, shape index: {}]
  %s3 = inlined_call_operand.vmem [shape: f32[128,128], index: 3, kind: input, shape index: {}]
  %s4 = inlined_call_operand.vmem [shape: f32[1,128], index: 4, kind: input, shape index: {}]
  %s5 = inlined_call_operand.vmem [shape: f32[128,128], index: 5, kind: input, shape index: {}]
  %s6 = inlined_call_operand.vmem [shape: f32[1,128], index: 6, kind: input, shape index: {}]
  %s7 = inlined_call_operand.vmem [shape: f32[128,128], index: 7, kind: input, shape index: {}]
  %s8 = inlined_call_operand.vmem [shape: f32[1,128], index: 8, kind: input, shape index: {}]
  %s9 = inlined_call_operand.vmem [shape: f32[8,128], index: 9, kind: output, shape index: {}]
  %s10 = sld [smem:[#allocation0]]
  $region46: #{neural_network_forward.1} parent=0
    _
  %s12 = ssub.s32 1, %s10
  %s13 = scalar_select 0, %s12, %s10
  // Predicated region
  $region2: #{neural_network_forward.1} parent=0 // pred_check
    _
  $region3: #{neural_network_forward.1} parent=0 // pred_check_branch
    %15 = sbr.rel (0) target = $region5
  $region4: #{neural_network_forward.1} parent=0 // pred_region
    _
  $region5: #{neural_network_forward.1} parent=0 // pred_fallthru
    _
  // Predicated region
  $region6: #{neural_network_forward.1} parent=0 // pred_check
    _
  $region7: #{neural_network_forward.1} parent=0 // pred_check_branch
    %17 = sbr.rel (0) target = $region9
  $region8: #{neural_network_forward.1} parent=0 // pred_region
    _
  $region9: #{neural_network_forward.1} parent=0 // pred_fallthru
    _
  // Predicated region
  $region10: #{neural_network_forward.1} parent=0 // pred_check
    _
  $region11: #{neural_network_forward.1} parent=0 // pred_check_branch
    %19 = sbr.rel (0) target = $region13
  $region12: #{neural_network_forward.1} parent=0 // pred_region
    _
  $region13: #{neural_network_forward.1} parent=0 // pred_fallthru
    _
  // Predicated region
  $region14: #{neural_network_forward.1} parent=0 // pred_check
    _
  $region15: #{neural_network_forward.1} parent=0 // pred_check_branch
    %21 = sbr.rel (0) target = $region17
  $region16: #{neural_network_forward.1} parent=0 // pred_region
    _
  $region17: #{neural_network_forward.1} parent=0 // pred_fallthru
    _
  // Predicated region
  $region18: #{neural_network_forward.1} parent=0 // pred_check
    _
  $region19: #{neural_network_forward.1} parent=0 // pred_check_branch
    %23 = sbr.rel (0) target = $region21
  $region20: #{neural_network_forward.1} parent=0 // pred_region
    _
  $region21: #{neural_network_forward.1} parent=0 // pred_fallthru
    _
  // Predicated region
  $region22: #{neural_network_forward.1} parent=0 // pred_check
    _
  $region23: #{neural_network_forward.1} parent=0 // pred_check_branch
    %25 = sbr.rel (0) target = $region25
  $region24: #{neural_network_forward.1} parent=0 // pred_region
    _
  $region25: #{neural_network_forward.1} parent=0 // pred_fallthru
    _
  // Predicated region
  $region26: #{neural_network_forward.1} parent=0 // pred_check
    _
  $region27: #{neural_network_forward.1} parent=0 // pred_check_branch
    %27 = sbr.rel (0) target = $region29
  $region28: #{neural_network_forward.1} parent=0 // pred_region
    _
  $region29: #{neural_network_forward.1} parent=0 // pred_fallthru
    _
  // Predicated region
  $region30: #{neural_network_forward.1} parent=0 // pred_check
    _
  $region31: #{neural_network_forward.1} parent=0 // pred_check_branch
    %29 = sbr.rel (0) target = $region33
  $region32: #{neural_network_forward.1} parent=0 // pred_region
    _
  $region33: #{neural_network_forward.1} parent=0 // pred_fallthru
    _
  // Predicated region
  $region34: #{neural_network_forward.1} parent=0 // pred_check
    _
  $region35: #{neural_network_forward.1} parent=0 // pred_check_branch
    %31 = sbr.rel (0) target = $region37
  $region36: #{neural_network_forward.1} parent=0 // pred_region
    _
  $region37: #{neural_network_forward.1} parent=0 // pred_fallthru
    _
  %v32 = vld [vmem:[%s0] sm:$0xff]
  %v33 = vld [vmem:[%s1] sm:$0xff]
  %v34 = vld [vmem:[%s1 + $0x8] sm:$0xff]
  %v35 = vld [vmem:[%s1 + $0x10] sm:$0xff]
  %v36 = vld [vmem:[%s1 + $0x18] sm:$0xff]
  %v37 = vld [vmem:[%s1 + $0x20] sm:$0xff]
  %v38 = vld [vmem:[%s1 + $0x28] sm:$0xff]
  %v39 = vld [vmem:[%s1 + $0x30] sm:$0xff]
  %v40 = vld [vmem:[%s1 + $0x38] sm:$0xff]
  %v41 = vld [vmem:[%s1 + $0x40] sm:$0xff]
  %v42 = vld [vmem:[%s1 + $0x48] sm:$0xff]
  %v43 = vld [vmem:[%s1 + $0x50] sm:$0xff]
  %v44 = vld [vmem:[%s1 + $0x58] sm:$0xff]
  %v45 = vld [vmem:[%s1 + $0x60] sm:$0xff]
  %v46 = vld [vmem:[%s1 + $0x68] sm:$0xff]
  %v47 = vld [vmem:[%s1 + $0x70] sm:$0xff]
  %v48 = vld [vmem:[%s1 + $0x78] sm:$0xff]
  %v49 = vld [vmem:[%s2] sm:$0x1]
  %v51 = vlaneseq
  %v52 = vshrl.u32 %v51, 7
  %v53 = vsub.s32 0, %v52
  %v54 = vrot.slane %v49, %v53
  %56 = vmatprep.subr.mxu0 0.0
  %57 = vmatpush1.msra.mxu0 %v48
  %58 = vmatprep.subr.mxu0 0.0
  %59 = vmatpush1.msra.mxu0 %v47
  %60 = vmatprep.subr.mxu0 0.0
  %61 = vmatpush1.msra.mxu0 %v46
  %62 = vmatprep.subr.mxu0 0.0
  %63 = vmatpush1.msra.mxu0 %v45
  %64 = vmatprep.subr.mxu0 0.0
  %65 = vmatpush1.msra.mxu0 %v44
  %66 = vmatprep.subr.mxu0 0.0
  %67 = vmatpush1.msra.mxu0 %v43
  %68 = vmatprep.subr.mxu0 0.0
  %69 = vmatpush1.msra.mxu0 %v42
  %70 = vmatprep.subr.mxu0 0.0
  %71 = vmatpush1.msra.mxu0 %v41
  %72 = vmatprep.subr.mxu0 0.0
  %73 = vmatpush1.msra.mxu0 %v40
  %74 = vmatprep.subr.mxu0 0.0
  %75 = vmatpush1.msra.mxu0 %v39
  %76 = vmatprep.subr.mxu0 0.0
  %77 = vmatpush1.msra.mxu0 %v38
  %78 = vmatprep.subr.mxu0 0.0
  %79 = vmatpush1.msra.mxu0 %v37
  %80 = vmatprep.subr.mxu0 0.0
  %81 = vmatpush1.msra.mxu0 %v36
  %82 = vmatprep.subr.mxu0 0.0
  %83 = vmatpush1.msra.mxu0 %v35
  %84 = vmatprep.subr.mxu0 0.0
  %85 = vmatpush1.msra.mxu0 %v34
  %86 = vmatprep.subr.mxu0 0.0
  %87 = vmatpush1.msra.mxu0 %v33
  %88 = vmatprep.subr.mxu0 0.0
  %89 = vmatpush2.msra.mxu0 0.0
  %90 = vmatprep.subr.mxu0 0.0
  %91 = vmatpush2.msra.mxu0 0.0
  %92 = vmatprep.subr.mxu0 0.0
  %93 = vmatpush2.msra.mxu0 0.0
  %94 = vmatprep.subr.mxu0 0.0
  %95 = vmatpush2.msra.mxu0 0.0
  %96 = vmatprep.subr.mxu0 0.0
  %97 = vmatpush2.msra.mxu0 0.0
  %98 = vmatprep.subr.mxu0 0.0
  %99 = vmatpush2.msra.mxu0 0.0
  %100 = vmatprep.subr.mxu0 0.0
  %101 = vmatpush2.msra.mxu0 0.0
  %102 = vmatprep.subr.mxu0 0.0
  %103 = vmatpush2.msra.mxu0 0.0
  %104 = vmatprep.subr.mxu0 0.0
  %105 = vmatpush2.msra.mxu0 0.0
  %106 = vmatprep.subr.mxu0 0.0
  %107 = vmatpush2.msra.mxu0 0.0
  %108 = vmatprep.subr.mxu0 0.0
  %109 = vmatpush2.msra.mxu0 0.0
  %110 = vmatprep.subr.mxu0 0.0
  %111 = vmatpush2.msra.mxu0 0.0
  %112 = vmatprep.subr.mxu0 0.0
  %113 = vmatpush2.msra.mxu0 0.0
  %114 = vmatprep.subr.mxu0 0.0
  %115 = vmatpush2.msra.mxu0 0.0
  %116 = vmatprep.subr.mxu0 0.0
  %117 = vmatpush2.msra.mxu0 0.0
  %118 = vmatprep.subr.mxu0 0.0
  %119 = vmatpush2.msra.mxu0 0.0
  %120 = vmatprep.mubr.f32.mxu0 0.0
  %121 = vmatmul.mubr.f32.gmra.mxu0 %v32
  %v122 = vpop.f32.mrf.mxu0
  %v123 = vadd.f32 %v54, %v122
  %v124 = vpop.f32.mrf.mxu0
  %125 = vdwg.mxu0
  %vm126 = vcmp.ge.f32.partialorder %v123, 0.0
  %v127 = vmul.f32 %v123, 0.01
  %v128 = vsel %vm126, %v123, %v127
  %v129 = vld [vmem:[%s3] sm:$0xff]
  %v130 = vld [vmem:[%s3 + $0x8] sm:$0xff]
  %v131 = vld [vmem:[%s3 + $0x10] sm:$0xff]
  %v132 = vld [vmem:[%s3 + $0x18] sm:$0xff]
  %v133 = vld [vmem:[%s3 + $0x20] sm:$0xff]
  %v134 = vld [vmem:[%s3 + $0x28] sm:$0xff]
  %v135 = vld [vmem:[%s3 + $0x30] sm:$0xff]
  %v136 = vld [vmem:[%s3 + $0x38] sm:$0xff]
  %v137 = vld [vmem:[%s3 + $0x40] sm:$0xff]
  %v138 = vld [vmem:[%s3 + $0x48] sm:$0xff]
  %v139 = vld [vmem:[%s3 + $0x50] sm:$0xff]
  %v140 = vld [vmem:[%s3 + $0x58] sm:$0xff]
  %v141 = vld [vmem:[%s3 + $0x60] sm:$0xff]
  %v142 = vld [vmem:[%s3 + $0x68] sm:$0xff]
  %v143 = vld [vmem:[%s3 + $0x70] sm:$0xff]
  %v144 = vld [vmem:[%s3 + $0x78] sm:$0xff]
  %v145 = vld [vmem:[%s4] sm:$0x1]
  %v147 = vlaneseq
  %v148 = vshrl.u32 %v147, 7
  %v149 = vsub.s32 0, %v148
  %v150 = vrot.slane %v145, %v149
  %152 = vmatprep.subr.mxu0 0.0
  %153 = vmatpush1.msra.mxu0 %v144
  %154 = vmatprep.subr.mxu0 0.0
  %155 = vmatpush1.msra.mxu0 %v143
  %156 = vmatprep.subr.mxu0 0.0
  %157 = vmatpush1.msra.mxu0 %v142
  %158 = vmatprep.subr.mxu0 0.0
  %159 = vmatpush1.msra.mxu0 %v141
  %160 = vmatprep.subr.mxu0 0.0
  %161 = vmatpush1.msra.mxu0 %v140
  %162 = vmatprep.subr.mxu0 0.0
  %163 = vmatpush1.msra.mxu0 %v139
  %164 = vmatprep.subr.mxu0 0.0
  %165 = vmatpush1.msra.mxu0 %v138
  %166 = vmatprep.subr.mxu0 0.0
  %167 = vmatpush1.msra.mxu0 %v137
  %168 = vmatprep.subr.mxu0 0.0
  %169 = vmatpush1.msra.mxu0 %v136
  %170 = vmatprep.subr.mxu0 0.0
  %171 = vmatpush1.msra.mxu0 %v135
  %172 = vmatprep.subr.mxu0 0.0
  %173 = vmatpush1.msra.mxu0 %v134
  %174 = vmatprep.subr.mxu0 0.0
  %175 = vmatpush1.msra.mxu0 %v133
  %176 = vmatprep.subr.mxu0 0.0
  %177 = vmatpush1.msra.mxu0 %v132
  %178 = vmatprep.subr.mxu0 0.0
  %179 = vmatpush1.msra.mxu0 %v131
  %180 = vmatprep.subr.mxu0 0.0
  %181 = vmatpush1.msra.mxu0 %v130
  %182 = vmatprep.subr.mxu0 0.0
  %183 = vmatpush1.msra.mxu0 %v129
  %184 = vmatprep.subr.mxu0 0.0
  %185 = vmatpush2.msra.mxu0 0.0
  %186 = vmatprep.subr.mxu0 0.0
  %187 = vmatpush2.msra.mxu0 0.0
  %188 = vmatprep.subr.mxu0 0.0
  %189 = vmatpush2.msra.mxu0 0.0
  %190 = vmatprep.subr.mxu0 0.0
  %191 = vmatpush2.msra.mxu0 0.0
  %192 = vmatprep.subr.mxu0 0.0
  %193 = vmatpush2.msra.mxu0 0.0
  %194 = vmatprep.subr.mxu0 0.0
  %195 = vmatpush2.msra.mxu0 0.0
  %196 = vmatprep.subr.mxu0 0.0
  %197 = vmatpush2.msra.mxu0 0.0
  %198 = vmatprep.subr.mxu0 0.0
  %199 = vmatpush2.msra.mxu0 0.0
  %200 = vmatprep.subr.mxu0 0.0
  %201 = vmatpush2.msra.mxu0 0.0
  %202 = vmatprep.subr.mxu0 0.0
  %203 = vmatpush2.msra.mxu0 0.0
  %204 = vmatprep.subr.mxu0 0.0
  %205 = vmatpush2.msra.mxu0 0.0
  %206 = vmatprep.subr.mxu0 0.0
  %207 = vmatpush2.msra.mxu0 0.0
  %208 = vmatprep.subr.mxu0 0.0
  %209 = vmatpush2.msra.mxu0 0.0
  %210 = vmatprep.subr.mxu0 0.0
  %211 = vmatpush2.msra.mxu0 0.0
  %212 = vmatprep.subr.mxu0 0.0
  %213 = vmatpush2.msra.mxu0 0.0
  %214 = vmatprep.subr.mxu0 0.0
  %215 = vmatpush2.msra.mxu0 0.0
  %216 = vmatprep.mubr.f32.mxu0 0.0
  %217 = vmatmul.mubr.f32.gmra.mxu0 %v128
  %v218 = vpop.f32.mrf.mxu0
  %v219 = vadd.f32 %v150, %v218
  %v220 = vpop.f32.mrf.mxu0
  %221 = vdwg.mxu0
  %vm222 = vcmp.ge.f32.partialorder %v219, 0.0
  %v223 = vmul.f32 %v219, 0.01
  %v224 = vsel %vm222, %v219, %v223
  %v225 = vld [vmem:[%s5] sm:$0xff]
  %v226 = vld [vmem:[%s5 + $0x8] sm:$0xff]
  %v227 = vld [vmem:[%s5 + $0x10] sm:$0xff]
  %v228 = vld [vmem:[%s5 + $0x18] sm:$0xff]
  %v229 = vld [vmem:[%s5 + $0x20] sm:$0xff]
  %v230 = vld [vmem:[%s5 + $0x28] sm:$0xff]
  %v231 = vld [vmem:[%s5 + $0x30] sm:$0xff]
  %v232 = vld [vmem:[%s5 + $0x38] sm:$0xff]
  %v233 = vld [vmem:[%s5 + $0x40] sm:$0xff]
  %v234 = vld [vmem:[%s5 + $0x48] sm:$0xff]
  %v235 = vld [vmem:[%s5 + $0x50] sm:$0xff]
  %v236 = vld [vmem:[%s5 + $0x58] sm:$0xff]
  %v237 = vld [vmem:[%s5 + $0x60] sm:$0xff]
  %v238 = vld [vmem:[%s5 + $0x68] sm:$0xff]
  %v239 = vld [vmem:[%s5 + $0x70] sm:$0xff]
  %v240 = vld [vmem:[%s5 + $0x78] sm:$0xff]
  %v241 = vld [vmem:[%s6] sm:$0x1]
  %v243 = vlaneseq
  %v244 = vshrl.u32 %v243, 7
  %v245 = vsub.s32 0, %v244
  %v246 = vrot.slane %v241, %v245
  %248 = vmatprep.subr.mxu0 0.0
  %249 = vmatpush1.msra.mxu0 %v240
  %250 = vmatprep.subr.mxu0 0.0
  %251 = vmatpush1.msra.mxu0 %v239
  %252 = vmatprep.subr.mxu0 0.0
  %253 = vmatpush1.msra.mxu0 %v238
  %254 = vmatprep.subr.mxu0 0.0
  %255 = vmatpush1.msra.mxu0 %v237
  %256 = vmatprep.subr.mxu0 0.0
  %257 = vmatpush1.msra.mxu0 %v236
  %258 = vmatprep.subr.mxu0 0.0
  %259 = vmatpush1.msra.mxu0 %v235
  %260 = vmatprep.subr.mxu0 0.0
  %261 = vmatpush1.msra.mxu0 %v234
  %262 = vmatprep.subr.mxu0 0.0
  %263 = vmatpush1.msra.mxu0 %v233
  %264 = vmatprep.subr.mxu0 0.0
  %265 = vmatpush1.msra.mxu0 %v232
  %266 = vmatprep.subr.mxu0 0.0
  %267 = vmatpush1.msra.mxu0 %v231
  %268 = vmatprep.subr.mxu0 0.0
  %269 = vmatpush1.msra.mxu0 %v230
  %270 = vmatprep.subr.mxu0 0.0
  %271 = vmatpush1.msra.mxu0 %v229
  %272 = vmatprep.subr.mxu0 0.0
  %273 = vmatpush1.msra.mxu0 %v228
  %274 = vmatprep.subr.mxu0 0.0
  %275 = vmatpush1.msra.mxu0 %v227
  %276 = vmatprep.subr.mxu0 0.0
  %277 = vmatpush1.msra.mxu0 %v226
  %278 = vmatprep.subr.mxu0 0.0
  %279 = vmatpush1.msra.mxu0 %v225
  %280 = vmatprep.subr.mxu0 0.0
  %281 = vmatpush2.msra.mxu0 0.0
  %282 = vmatprep.subr.mxu0 0.0
  %283 = vmatpush2.msra.mxu0 0.0
  %284 = vmatprep.subr.mxu0 0.0
  %285 = vmatpush2.msra.mxu0 0.0
  %286 = vmatprep.subr.mxu0 0.0
  %287 = vmatpush2.msra.mxu0 0.0
  %288 = vmatprep.subr.mxu0 0.0
  %289 = vmatpush2.msra.mxu0 0.0
  %290 = vmatprep.subr.mxu0 0.0
  %291 = vmatpush2.msra.mxu0 0.0
  %292 = vmatprep.subr.mxu0 0.0
  %293 = vmatpush2.msra.mxu0 0.0
  %294 = vmatprep.subr.mxu0 0.0
  %295 = vmatpush2.msra.mxu0 0.0
  %296 = vmatprep.subr.mxu0 0.0
  %297 = vmatpush2.msra.mxu0 0.0
  %298 = vmatprep.subr.mxu0 0.0
  %299 = vmatpush2.msra.mxu0 0.0
  %300 = vmatprep.subr.mxu0 0.0
  %301 = vmatpush2.msra.mxu0 0.0
  %302 = vmatprep.subr.mxu0 0.0
  %303 = vmatpush2.msra.mxu0 0.0
  %304 = vmatprep.subr.mxu0 0.0
  %305 = vmatpush2.msra.mxu0 0.0
  %306 = vmatprep.subr.mxu0 0.0
  %307 = vmatpush2.msra.mxu0 0.0
  %308 = vmatprep.subr.mxu0 0.0
  %309 = vmatpush2.msra.mxu0 0.0
  %310 = vmatprep.subr.mxu0 0.0
  %311 = vmatpush2.msra.mxu0 0.0
  %312 = vmatprep.mubr.f32.mxu0 0.0
  %313 = vmatmul.mubr.f32.gmra.mxu0 %v224
  %v314 = vpop.f32.mrf.mxu0
  %v315 = vadd.f32 %v246, %v314
  %v316 = vpop.f32.mrf.mxu0
  %317 = vdwg.mxu0
  %vm318 = vcmp.ge.f32.partialorder %v315, 0.0
  %v319 = vmul.f32 %v315, 0.01
  %v320 = vsel %vm318, %v315, %v319
  %v321 = vld [vmem:[%s7] sm:$0xff]
  %v322 = vld [vmem:[%s7 + $0x8] sm:$0xff]
  %v323 = vld [vmem:[%s7 + $0x10] sm:$0xff]
  %v324 = vld [vmem:[%s7 + $0x18] sm:$0xff]
  %v325 = vld [vmem:[%s7 + $0x20] sm:$0xff]
  %v326 = vld [vmem:[%s7 + $0x28] sm:$0xff]
  %v327 = vld [vmem:[%s7 + $0x30] sm:$0xff]
  %v328 = vld [vmem:[%s7 + $0x38] sm:$0xff]
  %v329 = vld [vmem:[%s7 + $0x40] sm:$0xff]
  %v330 = vld [vmem:[%s7 + $0x48] sm:$0xff]
  %v331 = vld [vmem:[%s7 + $0x50] sm:$0xff]
  %v332 = vld [vmem:[%s7 + $0x58] sm:$0xff]
  %v333 = vld [vmem:[%s7 + $0x60] sm:$0xff]
  %v334 = vld [vmem:[%s7 + $0x68] sm:$0xff]
  %v335 = vld [vmem:[%s7 + $0x70] sm:$0xff]
  %v336 = vld [vmem:[%s7 + $0x78] sm:$0xff]
  %v337 = vld [vmem:[%s8] sm:$0x1]
  %v339 = vlaneseq
  %v340 = vshrl.u32 %v339, 7
  %v341 = vsub.s32 0, %v340
  %v342 = vrot.slane %v337, %v341
  %344 = vmatprep.subr.mxu0 0.0
  %345 = vmatpush1.msra.mxu0 %v336
  %346 = vmatprep.subr.mxu0 0.0
  %347 = vmatpush1.msra.mxu0 %v335
  %348 = vmatprep.subr.mxu0 0.0
  %349 = vmatpush1.msra.mxu0 %v334
  %350 = vmatprep.subr.mxu0 0.0
  %351 = vmatpush1.msra.mxu0 %v333
  %352 = vmatprep.subr.mxu0 0.0
  %353 = vmatpush1.msra.mxu0 %v332
  %354 = vmatprep.subr.mxu0 0.0
  %355 = vmatpush1.msra.mxu0 %v331
  %356 = vmatprep.subr.mxu0 0.0
  %357 = vmatpush1.msra.mxu0 %v330
  %358 = vmatprep.subr.mxu0 0.0
  %359 = vmatpush1.msra.mxu0 %v329
  %360 = vmatprep.subr.mxu0 0.0
  %361 = vmatpush1.msra.mxu0 %v328
  %362 = vmatprep.subr.mxu0 0.0
  %363 = vmatpush1.msra.mxu0 %v327
  %364 = vmatprep.subr.mxu0 0.0
  %365 = vmatpush1.msra.mxu0 %v326
  %366 = vmatprep.subr.mxu0 0.0
  %367 = vmatpush1.msra.mxu0 %v325
  %368 = vmatprep.subr.mxu0 0.0
  %369 = vmatpush1.msra.mxu0 %v324
  %370 = vmatprep.subr.mxu0 0.0
  %371 = vmatpush1.msra.mxu0 %v323
  %372 = vmatprep.subr.mxu0 0.0
  %373 = vmatpush1.msra.mxu0 %v322
  %374 = vmatprep.subr.mxu0 0.0
  %375 = vmatpush1.msra.mxu0 %v321
  %376 = vmatprep.subr.mxu0 0.0
  %377 = vmatpush2.msra.mxu0 0.0
  %378 = vmatprep.subr.mxu0 0.0
  %379 = vmatpush2.msra.mxu0 0.0
  %380 = vmatprep.subr.mxu0 0.0
  %381 = vmatpush2.msra.mxu0 0.0
  %382 = vmatprep.subr.mxu0 0.0
  %383 = vmatpush2.msra.mxu0 0.0
  %384 = vmatprep.subr.mxu0 0.0
  %385 = vmatpush2.msra.mxu0 0.0
  %386 = vmatprep.subr.mxu0 0.0
  %387 = vmatpush2.msra.mxu0 0.0
  %388 = vmatprep.subr.mxu0 0.0
  %389 = vmatpush2.msra.mxu0 0.0
  %390 = vmatprep.subr.mxu0 0.0
  %391 = vmatpush2.msra.mxu0 0.0
  %392 = vmatprep.subr.mxu0 0.0
  %393 = vmatpush2.msra.mxu0 0.0
  %394 = vmatprep.subr.mxu0 0.0
  %395 = vmatpush2.msra.mxu0 0.0
  %396 = vmatprep.subr.mxu0 0.0
  %397 = vmatpush2.msra.mxu0 0.0
  %398 = vmatprep.subr.mxu0 0.0
  %399 = vmatpush2.msra.mxu0 0.0
  %400 = vmatprep.subr.mxu0 0.0
  %401 = vmatpush2.msra.mxu0 0.0
  %402 = vmatprep.subr.mxu0 0.0
  %403 = vmatpush2.msra.mxu0 0.0
  %404 = vmatprep.subr.mxu0 0.0
  %405 = vmatpush2.msra.mxu0 0.0
  %406 = vmatprep.subr.mxu0 0.0
  %407 = vmatpush2.msra.mxu0 0.0
  %408 = vmatprep.mubr.f32.mxu0 0.0
  %409 = vmatmul.mubr.f32.gmra.mxu0 %v320
  %v410 = vpop.f32.mrf.mxu0
  %v411 = vadd.f32 %v342, %v410
  %v412 = vpop.f32.mrf.mxu0
  %413 = vdwg.mxu0
  %414 = vst [vmem:[%s9] sm:$0xff] %v411
  // Predicated region
  $region38: #{neural_network_forward.1} parent=0 // pred_check
    _
  $region39: #{neural_network_forward.1} parent=0 // pred_check_branch
    %416 = sbr.rel (0) target = $region41
  $region40: #{neural_network_forward.1} parent=0 // pred_region
    _
  $region41: #{neural_network_forward.1} parent=0 // pred_fallthru
    _
  // Predicated region
  $region42: #{neural_network_forward.1} parent=0 // pred_check
    _
  $region43: #{neural_network_forward.1} parent=0 // pred_check_branch
    %418 = sbr.rel (0) target = $region45
  $region44: #{neural_network_forward.1} parent=0 // pred_region
    _
  $region45: #{neural_network_forward.1} parent=0 // pred_fallthru
    _

</llo_original>
